<compile_context>
chip_gen: v5e
topology: v5e:2x2
jax: 0.10.0
libtpu: 0.0.40
codegen_flags: <defaults>
</compile_context>

<pallas_src>
import functools

import jax
import jax.numpy as jnp
from jax import lax
from jax.experimental import pallas as pl
from jax.experimental.pallas import tpu as pltpu

EPS = 1e-5


def _vmem_limit_bytes():
    """Per-generation VMEM budget: ~3/4 of physical (48 MiB on v7x's 64 MiB/TC,
    ~96 MiB on v5e/v6e's 128 MiB).  Falls back to a safe 48 MiB."""
    try:
        cap = getattr(pltpu.get_tpu_info(), "vmem_capacity_bytes", None)
    except Exception:
        cap = None
    if not cap:
        return 48 * 1024 * 1024
    return int(min(cap * 3 // 4, 100 * 1024 * 1024))


# ---------------------------------------------------------------------------
# Kernel 1: (precomputed BN1 scale/bias) + ReLU + 1x1 conv (channel matmul).
# Channel-first: x block is (Cin, TL) with TL spatial positions on lanes, so
# the y output block (Cmid, TL) is lane-dense.  Emits per-tile sum / M2 of the
# f32 y so the wrapper can form global BN2 batch statistics (Chan combine)
# without re-reading y; y itself is stored bf16.
# ---------------------------------------------------------------------------
def _bn_relu_conv1x1_kernel(x_ref, scale_ref, bias_ref, w_ref,
                            y_ref, ysum_ref, ym2_ref, *, inv_n):
    x = x_ref[0]                                              # (Cin, TL) f32
    a = jnp.maximum(x * scale_ref[...] + bias_ref[...], 0.0)  # BN1 affine + ReLU
    y = jnp.dot(w_ref[...], a.astype(jnp.bfloat16),           # (Cmid, TL), f32 acc
                preferred_element_type=jnp.float32)
    # Stats from the f32 accumulator BEFORE the bf16 cast.
    s = jnp.sum(y, axis=1, keepdims=True)                     # (Cmid, 1)
    mu = s * inv_n
    m2 = jnp.sum(jnp.square(y - mu), axis=1, keepdims=True)   # (Cmid, 1)
    ysum_ref[0, 0] = s
    ym2_ref[0, 0] = m2
    y_ref[0] = y.astype(jnp.bfloat16)                         # bf16 intermediate


# ---------------------------------------------------------------------------
# Kernel 2: (precomputed BN2 scale/bias) + ReLU + 3x3 conv (padding=1).
# One grid step = one image.  The nine taps are staged as an im2col slab
# (9*Cmid, HW) in VMEM via XLU lane rotations + (1, HW) boundary masks, then a
# single K = 9*Cmid bf16 matmul produces the lane-dense (Cout, HW) output.
# ---------------------------------------------------------------------------
def _bn_relu_conv3x3_kernel(y_ref, scale_ref, bias_ref, w_ref, o_ref, col_ref,
                            *, H, W):
    HW = H * W
    y = y_ref[0].astype(jnp.float32)                          # upcast only for BN2
    a = jnp.maximum(y * scale_ref[...] + bias_ref[...], 0.0)  # (Cmid, HW) f32
    Cmid = a.shape[0]

    # Per-axis boundary masks, combined per tap (cheap (1, HW) VPU work).
    pos = lax.broadcasted_iota(jnp.int32, (1, HW), 1)
    row = pos // W
    col = pos % W
    ones = jnp.ones((1, HW), jnp.float32)
    rmask = ((row >= 1).astype(jnp.float32), ones,
             (row <= H - 2).astype(jnp.float32))
    cmask = ((col >= 1).astype(jnp.float32), ones,
             (col <= W - 2).astype(jnp.float32))

    # im2col: tap (kh, kw) row-block holds a[:, p + dh*W + dw] (0 outside the
    # image).  pltpu.roll == jnp.roll semantics, so shift = (-d) % HW gives
    # shifted[p] = a[(p + d) mod HW]; the mask zeroes wrapped/invalid positions.
    for kh in range(3):
        for kw in range(3):
            dh, dw = kh - 1, kw - 1
            d = dh * W + dw
            t = a if d == 0 else pltpu.roll(a, (-d) % HW, axis=1)
            if not (kh == 1 and kw == 1):
                t = t * (rmask[kh] * cmask[kw])
            col_ref[pl.ds((kh * 3 + kw) * Cmid, Cmid), :] = t.astype(jnp.bfloat16)

    # Single fused matmul: (Cout, 9*Cmid) @ (9*Cmid, HW) -> lane-dense output.
    o_ref[0] = jnp.dot(w_ref[...], col_ref[...],
                       preferred_element_type=jnp.float32)


# ---------------------------------------------------------------------------
# Wrapper: BN statistics, two pallas_calls, channel concat.  The NCHW layout is
# kept throughout (only free reshapes, no transposes).
# ---------------------------------------------------------------------------
def bottleneck_forward(x_nchw, params, growth_rate):
    N, Cin, H, W = x_nchw.shape
    Cmid = 4 * growth_rate
    Cout = growth_rate
    HW = H * W
    M = N * HW

    x3 = x_nchw.reshape(N, Cin, HW)                           # free reshape

    # BN1 training-mode batch statistics (tiny per-channel XLA reduction).
    mean1 = jnp.mean(x3, axis=(0, 2))[:, None]                # (Cin, 1)
    var1 = jnp.mean(jnp.square(x3 - mean1[None]), axis=(0, 2))[:, None]
    scale1 = params["gamma1"] * lax.rsqrt(var1 + EPS)
    bias1 = params["beta1"] - mean1 * scale1

    w1_bf = params["w1"].astype(jnp.bfloat16)                 # (Cmid, Cin)
    # (Cout, Cmid, 3, 3) -> (Cout, 9*Cmid), columns ordered (kh, kw, c).
    w2r_bf = jnp.transpose(params["w2"], (0, 2, 3, 1)).reshape(
        Cout, 9 * Cmid).astype(jnp.bfloat16)

    vmem_limit = _vmem_limit_bytes()

    # Large lane tile for kernel 1 (amortises per-step overhead), multiple of
    # 128, dividing HW.
    TL = HW
    for cand in (2048, 1024, 512, 256, 128):
        if HW % cand == 0:
            TL = cand
            break
    S = HW // TL

    y3, ysum, ym2 = pl.pallas_call(
        functools.partial(_bn_relu_conv1x1_kernel, inv_n=1.0 / TL),
        out_shape=(
            jax.ShapeDtypeStruct((N, Cmid, HW), jnp.bfloat16),      # y (bf16)
            jax.ShapeDtypeStruct((N, S, Cmid, 1), jnp.float32),     # tile sums
            jax.ShapeDtypeStruct((N, S, Cmid, 1), jnp.float32),     # tile M2
        ),
        grid=(N, S),
        in_specs=[
            pl.BlockSpec((1, Cin, TL), lambda n, s: (n, 0, s)),
            pl.BlockSpec((Cin, 1), lambda n, s: (0, 0)),
            pl.BlockSpec((Cin, 1), lambda n, s: (0, 0)),
            pl.BlockSpec((Cmid, Cin), lambda n, s: (0, 0)),
        ],
        out_specs=(
            pl.BlockSpec((1, Cmid, TL), lambda n, s: (n, 0, s)),
            pl.BlockSpec((1, 1, Cmid, 1), lambda n, s: (n, s, 0, 0)),
            pl.BlockSpec((1, 1, Cmid, 1), lambda n, s: (n, s, 0, 0)),
        ),
        compiler_params=pltpu.CompilerParams(
            dimension_semantics=("parallel", "parallel"),
            vmem_limit_bytes=vmem_limit),
    )(x3, scale1, bias1, w1_bf)

    # BN2 batch statistics: Chan combination of per-tile (sum, M2) partials
    # (numerically stable; biased variance, as in PyTorch training-mode BN).
    n_tile = float(TL)
    tile_mean = ysum / n_tile                                 # (N, S, Cmid, 1)
    mean2 = jnp.sum(ysum, axis=(0, 1)) / M                    # (Cmid, 1)
    m2 = (jnp.sum(ym2, axis=(0, 1))
          + n_tile * jnp.sum(jnp.square(tile_mean - mean2), axis=(0, 1)))
    var2 = m2 / M                                             # (Cmid, 1)
    scale2 = params["gamma2"] * lax.rsqrt(var2 + EPS)
    bias2 = params["beta2"] - mean2 * scale2

    out3 = pl.pallas_call(
        functools.partial(_bn_relu_conv3x3_kernel, H=H, W=W),
        out_shape=jax.ShapeDtypeStruct((N, Cout, HW), jnp.float32),
        grid=(N,),
        in_specs=[
            pl.BlockSpec((1, Cmid, HW), lambda n: (n, 0, 0)),
            pl.BlockSpec((Cmid, 1), lambda n: (0, 0)),
            pl.BlockSpec((Cmid, 1), lambda n: (0, 0)),
            pl.BlockSpec((Cout, 9 * Cmid), lambda n: (0, 0)),
        ],
        out_specs=pl.BlockSpec((1, Cout, HW), lambda n: (n, 0, 0)),
        scratch_shapes=[pltpu.VMEM((9 * Cmid, HW), jnp.bfloat16)],
        compiler_params=pltpu.CompilerParams(
            dimension_semantics=("parallel",),
            vmem_limit_bytes=vmem_limit),
    )(y3, scale2, bias2, w2r_bf)
    # TODO(synk): for v7x small-batch shapes, split each image into row bands
    # (1-row halo) so both TensorCores get grid steps in kernel 2.

    out_nchw = out3.reshape(N, Cout, H, W)                    # free reshape
    # TODO(synk): in a full DenseNet block, have kernel 2 write into the
    # channel-offset slice of a preallocated (C_total, HW) slab
    # (input_output_aliases) so the concat never re-copies x.
    return jnp.concatenate([x_nchw, out_nchw], axis=1)        # torch.cat((x, out), 1)


# ---------------------------------------------------------------------------
# Pure-JAX reference (f32, HIGHEST precision) for a sanity check.
# ---------------------------------------------------------------------------
def reference_forward(x, params, growth_rate):
    def bn_relu(v, gamma, beta):
        mean = v.mean(axis=(0, 2, 3), keepdims=True)
        var = jnp.square(v - mean).mean(axis=(0, 2, 3), keepdims=True)
        g = gamma.reshape(1, -1, 1, 1)
        b = beta.reshape(1, -1, 1, 1)
        return jnp.maximum((v - mean) * g * lax.rsqrt(var + EPS) + b, 0.0)

    a1 = bn_relu(x, params["gamma1"], params["beta1"])
    w1_oihw = params["w1"][:, :, None, None]                  # (Cmid, Cin, 1, 1)
    y = lax.conv_general_dilated(a1, w1_oihw, (1, 1), "VALID",
                                 dimension_numbers=("NCHW", "OIHW", "NCHW"),
                                 precision=lax.Precision.HIGHEST)
    a2 = bn_relu(y, params["gamma2"], params["beta2"])
    out = lax.conv_general_dilated(a2, params["w2"], (1, 1), ((1, 1), (1, 1)),
                                   dimension_numbers=("NCHW", "OIHW", "NCHW"),
                                   precision=lax.Precision.HIGHEST)
    return jnp.concatenate([x, out], axis=1)


if __name__ == "__main__":
    # Small shapes consistent with BottleNeckLayer(inf, growth_rate).
    N, Cin, H, W = 2, 4, 16, 16
    growth_rate = 8
    Cmid, Cout = 4 * growth_rate, growth_rate

    key = jax.random.PRNGKey(0)
    kx, kw1, kw2 = jax.random.split(key, 3)

    x = jax.random.normal(kx, (N, Cin, H, W), dtype=jnp.float32)

    params = {
        # BatchNorm affine params (PyTorch default init: weight=1, bias=0).
        "gamma1": jnp.ones((Cin, 1), jnp.float32),
        "beta1": jnp.zeros((Cin, 1), jnp.float32),
        "gamma2": jnp.ones((Cmid, 1), jnp.float32),
        "beta2": jnp.zeros((Cmid, 1), jnp.float32),
        # Conv weights (fan-in scaled normal).
        # w1: 1x1 conv, (Cmid, Cin)                <=> torch (Cmid, Cin, 1, 1)
        "w1": jax.random.normal(kw1, (Cmid, Cin), jnp.float32) / jnp.sqrt(Cin),
        # w2: 3x3 conv, torch OIHW layout (Cout, Cmid, 3, 3)
        "w2": jax.random.normal(kw2, (Cout, Cmid, 3, 3), jnp.float32)
              / jnp.sqrt(9.0 * Cmid),
    }
    # TODO(synk): BatchNorm running_mean/running_var updates (training-mode side
    # effect) are not modeled; they do not affect this forward output.

    out = jax.block_until_ready(bottleneck_forward(x, params, growth_rate))
    ref = jax.block_until_ready(reference_forward(x, params, growth_rate))

    assert out.shape == (N, Cin + Cout, H, W), out.shape
    err = float(jnp.max(jnp.abs(out - ref)))
    # Tolerance reflects bf16 matmul operands / bf16-stored y (f32 accumulation)
    # vs the f32 HIGHEST-precision reference.
    if err > 5e-2:
        raise AssertionError(f"Pallas / reference mismatch: max abs err = {err}")

    print("KERNEL_OK")
</pallas_src>

<mosaic_0001>
module attributes {stable_mosaic.version = 11 : i64} {
  func.func @_bn_relu_conv1x1_kernel(%arg0: i32, %arg1: i32, %arg2: memref<1x4x256xf32, #tpu.memory_space<vmem>>, %arg3: memref<4x1xf32, #tpu.memory_space<vmem>>, %arg4: memref<4x1xf32, #tpu.memory_space<vmem>>, %arg5: memref<32x4xbf16, #tpu.memory_space<vmem>>, %arg6: memref<1x32x256xbf16, #tpu.memory_space<vmem>>, %arg7: memref<1x1x32x1xf32, #tpu.memory_space<vmem>>, %arg8: memref<1x1x32x1xf32, #tpu.memory_space<vmem>>) attributes {dimension_semantics = [#tpu.dimension_semantics<parallel>, #tpu.dimension_semantics<parallel>], iteration_bounds = array<i64: 2, 1>, scalar_prefetch = 0 : i64, scratch_operands = 0 : i64, tpu.core_type = #tpu.core_type<tc>, window_params = [{transform_indices = @transform_0, window_bounds = array<i64: 1, 4, 256>}, {pipeline_mode = #tpu.pipeline_mode<synchronous>, transform_indices = @transform_1, window_bounds = array<i64: 4, 1>}, {pipeline_mode = #tpu.pipeline_mode<synchronous>, transform_indices = @transform_2, window_bounds = array<i64: 4, 1>}, {pipeline_mode = #tpu.pipeline_mode<synchronous>, transform_indices = @transform_3, window_bounds = array<i64: 32, 4>}, {transform_indices = @transform_4, window_bounds = array<i64: 1, 32, 256>}, {transform_indices = @transform_5, window_bounds = array<i64: 1, 1, 32, 1>}, {transform_indices = @transform_6, window_bounds = array<i64: 1, 1, 32, 1>}]} {
    %c0 = arith.constant 0 : index
    %c0_0 = arith.constant 0 : index
    %c0_1 = arith.constant 0 : index
    %0 = vector.load %arg2[%c0, %c0_0, %c0_1] : memref<1x4x256xf32, #tpu.memory_space<vmem>>, vector<1x4x256xf32>
    %1 = vector.shape_cast %0 : vector<1x4x256xf32> to vector<4x256xf32>
    %c0_2 = arith.constant 0 : index
    %c0_3 = arith.constant 0 : index
    %2 = vector.load %arg3[%c0_2, %c0_3] : memref<4x1xf32, #tpu.memory_space<vmem>>, vector<4x1xf32>
    %3 = vector.broadcast %2 : vector<4x1xf32> to vector<4x256xf32>
    %4 = arith.mulf %1, %3 : vector<4x256xf32>
    %c0_4 = arith.constant 0 : index
    %c0_5 = arith.constant 0 : index
    %5 = vector.load %arg4[%c0_4, %c0_5] : memref<4x1xf32, #tpu.memory_space<vmem>>, vector<4x1xf32>
    %6 = vector.broadcast %5 : vector<4x1xf32> to vector<4x256xf32>
    %7 = arith.addf %4, %6 : vector<4x256xf32>
    %cst = arith.constant 0.000000e+00 : f32
    %8 = vector.broadcast %cst : f32 to vector<4x256xf32>
    %9 = arith.maximumf %7, %8 : vector<4x256xf32>
    %c0_6 = arith.constant 0 : index
    %c0_7 = arith.constant 0 : index
    %10 = vector.load %arg5[%c0_6, %c0_7] : memref<32x4xbf16, #tpu.memory_space<vmem>>, vector<32x4xbf16>
    %11 = arith.truncf %9 : vector<4x256xf32> to vector<4x256xbf16>
    %cst_8 = arith.constant dense<0.000000e+00> : vector<32x256xf32>
    %12 = tpu.matmul %10, %11, %cst_8 {dimension_numbers = #tpu.dot_dimension_numbers<[1], [0], [0], [1], [0, 0, 1, 1], [], []>} : vector<32x4xbf16>, vector<4x256xbf16>, vector<32x256xf32> -> vector<32x256xf32>
    %cst_9 = arith.constant dense<0.000000e+00> : vector<32xf32>
    %13 = vector.multi_reduction <add>, %12, %cst_9 [1] : vector<32x256xf32> to vector<32xf32>
    %14 = vector.shape_cast %13 : vector<32xf32> to vector<32x1xf32>
    %cst_10 = arith.constant 3.906250e-03 : f32
    %15 = vector.broadcast %cst_10 : f32 to vector<32x1xf32>
    %16 = arith.mulf %14, %15 : vector<32x1xf32>
    %17 = vector.broadcast %16 : vector<32x1xf32> to vector<32x256xf32>
    %18 = arith.subf %12, %17 : vector<32x256xf32>
    %19 = arith.mulf %18, %18 : vector<32x256xf32>
    %cst_11 = arith.constant dense<0.000000e+00> : vector<32xf32>
    %20 = vector.multi_reduction <add>, %19, %cst_11 [1] : vector<32x256xf32> to vector<32xf32>
    %21 = vector.shape_cast %20 : vector<32xf32> to vector<32x1xf32>
    %c0_12 = arith.constant 0 : index
    %c0_13 = arith.constant 0 : index
    %c0_14 = arith.constant 0 : index
    %c0_15 = arith.constant 0 : index
    %22 = vector.load %arg7[%c0_12, %c0_13, %c0_14, %c0_15] : memref<1x1x32x1xf32, #tpu.memory_space<vmem>>, vector<1x1x32x1xf32>
    %23 = vector.shape_cast %22 : vector<1x1x32x1xf32> to vector<32x1xf32>
    %24 = vector.shape_cast %14 : vector<32x1xf32> to vector<1x1x32x1xf32>
    tpu.vector_store %arg7[%c0_12, %c0_13, %c0_14, %c0_15], %24 {strides = array<i32>} : memref<1x1x32x1xf32, #tpu.memory_space<vmem>>, vector<1x1x32x1xf32>,
    %c0_16 = arith.constant 0 : index
    %c0_17 = arith.constant 0 : index
    %c0_18 = arith.constant 0 : index
    %c0_19 = arith.constant 0 : index
    %25 = vector.load %arg8[%c0_16, %c0_17, %c0_18, %c0_19] : memref<1x1x32x1xf32, #tpu.memory_space<vmem>>, vector<1x1x32x1xf32>
    %26 = vector.shape_cast %25 : vector<1x1x32x1xf32> to vector<32x1xf32>
    %27 = vector.shape_cast %21 : vector<32x1xf32> to vector<1x1x32x1xf32>
    tpu.vector_store %arg8[%c0_16, %c0_17, %c0_18, %c0_19], %27 {strides = array<i32>} : memref<1x1x32x1xf32, #tpu.memory_space<vmem>>, vector<1x1x32x1xf32>,
    %28 = arith.truncf %12 : vector<32x256xf32> to vector<32x256xbf16>
    %c0_20 = arith.constant 0 : index
    %c0_21 = arith.constant 0 : index
    %c0_22 = arith.constant 0 : index
    %29 = vector.load %arg6[%c0_20, %c0_21, %c0_22] : memref<1x32x256xbf16, #tpu.memory_space<vmem>>, vector<1x32x256xbf16>
    %30 = vector.shape_cast %29 : vector<1x32x256xbf16> to vector<32x256xbf16>
    %31 = vector.shape_cast %28 : vector<32x256xbf16> to vector<1x32x256xbf16>
    tpu.vector_store %arg6[%c0_20, %c0_21, %c0_22], %31 {strides = array<i32>} : memref<1x32x256xbf16, #tpu.memory_space<vmem>>, vector<1x32x256xbf16>,
    return
  }
  func.func @transform_0(%arg0: i32, %arg1: i32) -> (i32, i32, i32) {
    %c0_i32 = arith.constant 0 : i32
    %c0_i32_0 = arith.constant 0 : i32
    return %arg0, %c0_i32, %arg1 : i32, i32, i32
  }
  func.func @transform_1(%arg0: i32, %arg1: i32) -> (i32, i32) {
    %c0_i32 = arith.constant 0 : i32
    %c0_i32_0 = arith.constant 0 : i32
    %c0_i32_1 = arith.constant 0 : i32
    return %c0_i32, %c0_i32_0 : i32, i32
  }
  func.func @transform_2(%arg0: i32, %arg1: i32) -> (i32, i32) {
    %c0_i32 = arith.constant 0 : i32
    %c0_i32_0 = arith.constant 0 : i32
    %c0_i32_1 = arith.constant 0 : i32
    return %c0_i32, %c0_i32_0 : i32, i32
  }
  func.func @transform_3(%arg0: i32, %arg1: i32) -> (i32, i32) {
    %c0_i32 = arith.constant 0 : i32
    %c0_i32_0 = arith.constant 0 : i32
    %c0_i32_1 = arith.constant 0 : i32
    return %c0_i32, %c0_i32_0 : i32, i32
  }
  func.func @transform_4(%arg0: i32, %arg1: i32) -> (i32, i32, i32) {
    %c0_i32 = arith.constant 0 : i32
    %c0_i32_0 = arith.constant 0 : i32
    return %arg0, %c0_i32, %arg1 : i32, i32, i32
  }
  func.func @transform_5(%arg0: i32, %arg1: i32) -> (i32, i32, i32, i32) {
    %c0_i32 = arith.constant 0 : i32
    %c0_i32_0 = arith.constant 0 : i32
    %c0_i32_1 = arith.constant 0 : i32
    return %arg0, %arg1, %c0_i32, %c0_i32_0 : i32, i32, i32, i32
  }
  func.func @transform_6(%arg0: i32, %arg1: i32) -> (i32, i32, i32, i32) {
    %c0_i32 = arith.constant 0 : i32
    %c0_i32_0 = arith.constant 0 : i32
    %c0_i32_1 = arith.constant 0 : i32
    return %arg0, %arg1, %c0_i32, %c0_i32_0 : i32, i32, i32, i32
  }
}

</mosaic_0001>

<llo_original>
// kernel: tpu_custom_call.1
$region0: #{tpu_custom_call.1}
  #allocation0 [shape = 'u32[]', space=smem, size = 0x4, offset = 0x4, fixed_abs, tag = 'smem constant byte address 0x4 - core index']
  #allocation1 [shape = 'u32[72,128]{1,0:T(1,128)}', space=vmem, size = 0x9000, scoped, tag = 'internal scratch']
  %s0 = inlined_call_operand.vmem [shape: f32[2,4,256], index: 0, kind: input, shape index: {}]
  %s1 = inlined_call_operand.vmem [shape: f32[4,1], index: 1, kind: input, shape index: {}]
  %s2 = inlined_call_operand.vmem [shape: f32[4,1], index: 2, kind: input, shape index: {}]
  %s3 = inlined_call_operand.vmem [shape: bf16[32,4], index: 3, kind: input, shape index: {}]
  %s4 = inlined_call_operand.hbm [shape: bf16[2,32,256], index: 4, kind: output, shape index: {0}]
  %s5 = inlined_call_operand.vmem [shape: f32[2,1,32,1], index: 5, kind: output, shape index: {1}]
  %s6 = inlined_call_operand.vmem [shape: f32[2,1,32,1], index: 6, kind: output, shape index: {2}]
  %7 = xla_tuple %s4, %s5, %s6
  %s8 = sld [smem:[#allocation0]]
  $region65: #{tpu_custom_call.1} parent=0
    _
  %s10 = ssub.s32 1, %s8
  %s11 = scalar_select 0, %s10, %s8
  $region1: #{tpu_custom_call.1} parent=0
    #allocation2 [shape = 'u8[32768]{0}', space=vmem, size = 0x8000, scoped, tag = 'output window, operand 0']
    #allocation3 [shape = 's32[2]{0}', space=sflag, size = 0x8, scoped, tag = 'scoped memory for tpu_custom_call.1']
    %12 = vsyncpa [#allocation3], 0
    %s13 = scalar_lea.sflag [#allocation3], 1
    %14 = vsyncpa %s13, 0
    loop: start=0, step=1, limit=4
    $region2: #{tpu_custom_call.1} parent=1 // loop_pre_header
      _
    $region3: #{tpu_custom_call.1} parent=1 // loop_header
      %s16 = sphi 0, %s20
      %p17 = scmp.ge.s32.totalorder %s16, 4
      %s23 = sphi 0, %s35
      %s24 = sphi 0, %s31
      %s25 = sphi 0, %s23
      %s26 = sphi 0, %s24
      %s27 = sphi 0, %s25
      %s28 = sphi 0, %s26
      %s40 = sphi 0, %s42
      %s43 = sphi 0, %s40
      %s44 = sphi 0, %s43
      %s60 = sphi 0, %s44
      %s64 = sphi 0, %s64
      %s66 = sphi 0, %s64
      %s67 = sphi 0, %s66
      %s81 = sphi 0, %s67
      %s85 = sphi 0, %s85
      %s87 = sphi 0, %s85
      %s88 = sphi 0, %s87
      %s102 = sphi 0, %s88
      %s106 = sphi 0, %s106
      %s108 = sphi 0, %s106
      %s109 = sphi 0, %s108
      %s123 = sphi 0, %s109
      %s131 = sphi 0, %s133
      %s134 = sphi 0, %s131
      %s135 = sphi 0, %s134
      %s151 = sphi 0, %s135
      %s159 = sphi 0, %s161
      %s162 = sphi 0, %s159
      %s163 = sphi 0, %s162
      %s179 = sphi 0, %s163
      %s187 = sphi 0, %s189
      %s190 = sphi 0, %s187
      %s191 = sphi 0, %s190
      %s207 = sphi 0, %s191
    $region4: #{tpu_custom_call.1} parent=1 // loop_header_branch
      %19 = sbr.rel (%p17) target = $region8
    $region5: #{tpu_custom_call.1} parent=1 // loop_body
      %s21 = ssub.s32 %s16, 1
      %s22 = ssub.s32 %s16, 2
      %s29 = sadd.s32 1, %s24
      %p30 = scmp.ge.s32.totalorder %s29, 1
      %s31 = scalar_select %p30, 0, %s29
      %s32 = sadd.s32 1, %s23
      %s33 = scalar_select %p30, %s32, %s23
      %p34 = scmp.ge.s32.totalorder %s33, 2
      %s35 = scalar_select %p34, 0, %s33
      %s36 = ssub.s32 %s23, %s35
      %s37 = ssub.s32 %s24, %s31
      %s38 = sor.u32 %s36, %s37
      %p39 = scmp.eq.s32.totalorder %s38, 0
      %s41 = sadd.s32 %s40, 1
      %s42 = scalar_select %p39, %s40, %s41
      %p45 = pneg %p39
      %p46 = scmp.eq.s32.totalorder %s16, 1
      %p47 = por %p45, %p46
      %p48 = scmp.ne.s32.totalorder %s40, %s43
      %p49 = scmp.eq.s32.totalorder %s16, 0
      %p50 = por %p48, %p49
      %p51 = scmp.ne.s32.totalorder %s40, %s43
      %p52 = scmp.eq.s32.totalorder %s21, 1
      %p53 = por %p51, %p52
      %p54 = scmp.ne.s32.totalorder %s43, %s44
      %p55 = scmp.eq.s32.totalorder %s21, 0
      %p56 = por %p54, %p55
      %p57 = scmp.ne.s32.totalorder %s43, %s44
      %p58 = scmp.eq.s32.totalorder %s22, 1
      %p59 = por %p57, %p58
      %p61 = scmp.ne.s32.totalorder %s44, %s60
      %p62 = scmp.eq.s32.totalorder %s22, 0
      %p63 = por %p61, %p62
      %s65 = sadd.s32 %s64, 1
      %p68 = scmp.eq.s32.totalorder %s16, 1
      %p69 = scmp.ne.s32.totalorder %s64, %s66
      %p70 = scmp.eq.s32.totalorder %s16, 0
      %p71 = por %p69, %p70
      %p72 = scmp.ne.s32.totalorder %s64, %s66
      %p73 = scmp.eq.s32.totalorder %s21, 1
      %p74 = por %p72, %p73
      %p75 = scmp.ne.s32.totalorder %s66, %s67
      %p76 = scmp.eq.s32.totalorder %s21, 0
      %p77 = por %p75, %p76
      %p78 = scmp.ne.s32.totalorder %s66, %s67
      %p79 = scmp.eq.s32.totalorder %s22, 1
      %p80 = por %p78, %p79
      %p82 = scmp.ne.s32.totalorder %s67, %s81
      %p83 = scmp.eq.s32.totalorder %s22, 0
      %p84 = por %p82, %p83
      %s86 = sadd.s32 %s85, 1
      %p89 = scmp.eq.s32.totalorder %s16, 1
      %p90 = scmp.ne.s32.totalorder %s85, %s87
      %p91 = scmp.eq.s32.totalorder %s16, 0
      %p92 = por %p90, %p91
      %p93 = scmp.ne.s32.totalorder %s85, %s87
      %p94 = scmp.eq.s32.totalorder %s21, 1
      %p95 = por %p93, %p94
      %p96 = scmp.ne.s32.totalorder %s87, %s88
      %p97 = scmp.eq.s32.totalorder %s21, 0
      %p98 = por %p96, %p97
      %p99 = scmp.ne.s32.totalorder %s87, %s88
      %p100 = scmp.eq.s32.totalorder %s22, 1
      %p101 = por %p99, %p100
      %p103 = scmp.ne.s32.totalorder %s88, %s102
      %p104 = scmp.eq.s32.totalorder %s22, 0
      %p105 = por %p103, %p104
      %s107 = sadd.s32 %s106, 1
      %p110 = scmp.eq.s32.totalorder %s16, 1
      %p111 = scmp.ne.s32.totalorder %s106, %s108
      %p112 = scmp.eq.s32.totalorder %s16, 0
      %p113 = por %p111, %p112
      %p114 = scmp.ne.s32.totalorder %s106, %s108
      %p115 = scmp.eq.s32.totalorder %s21, 1
      %p116 = por %p114, %p115
      %p117 = scmp.ne.s32.totalorder %s108, %s109
      %p118 = scmp.eq.s32.totalorder %s21, 0
      %p119 = por %p117, %p118
      %p120 = scmp.ne.s32.totalorder %s108, %s109
      %p121 = scmp.eq.s32.totalorder %s22, 1
      %p122 = por %p120, %p121
      %p124 = scmp.ne.s32.totalorder %s109, %s123
      %p125 = scmp.eq.s32.totalorder %s22, 0
      %p126 = por %p124, %p125
      %s127 = ssub.s32 %s23, %s35
      %s128 = ssub.s32 %s24, %s31
      %s129 = sor.u32 %s127, %s128
      %p130 = scmp.eq.s32.totalorder %s129, 0
      %s132 = sadd.s32 %s131, 1
      %s133 = scalar_select %p130, %s131, %s132
      %p136 = pneg %p130
      %p137 = scmp.eq.s32.totalorder %s16, 1
      %p138 = por %p136, %p137
      %p139 = scmp.ne.s32.totalorder %s131, %s134
      %p140 = scmp.eq.s32.totalorder %s16, 0
      %p141 = por %p139, %p140
      %p142 = scmp.ne.s32.totalorder %s131, %s134
      %p143 = scmp.eq.s32.totalorder %s21, 1
      %p144 = por %p142, %p143
      %p145 = scmp.ne.s32.totalorder %s134, %s135
      %p146 = scmp.eq.s32.totalorder %s21, 0
      %p147 = por %p145, %p146
      %p148 = scmp.ne.s32.totalorder %s134, %s135
      %p149 = scmp.eq.s32.totalorder %s22, 1
      %p150 = por %p148, %p149
      %p152 = scmp.ne.s32.totalorder %s135, %s151
      %p153 = scmp.eq.s32.totalorder %s22, 0
      %p154 = por %p152, %p153
      %s155 = ssub.s32 %s23, %s35
      %s156 = ssub.s32 %s24, %s31
      %s157 = sor.u32 %s155, %s156
      %p158 = scmp.eq.s32.totalorder %s157, 0
      %s160 = sadd.s32 %s159, 1
      %s161 = scalar_select %p158, %s159, %s160
      %p164 = pneg %p158
      %p165 = scmp.eq.s32.totalorder %s16, 1
      %p166 = por %p164, %p165
      %p167 = scmp.ne.s32.totalorder %s159, %s162
      %p168 = scmp.eq.s32.totalorder %s16, 0
      %p169 = por %p167, %p168
      %p170 = scmp.ne.s32.totalorder %s159, %s162
      %p171 = scmp.eq.s32.totalorder %s21, 1
      %p172 = por %p170, %p171
      %p173 = scmp.ne.s32.totalorder %s162, %s163
      %p174 = scmp.eq.s32.totalorder %s21, 0
      %p175 = por %p173, %p174
      %p176 = scmp.ne.s32.totalorder %s162, %s163
      %p177 = scmp.eq.s32.totalorder %s22, 1
      %p178 = por %p176, %p177
      %p180 = scmp.ne.s32.totalorder %s163, %s179
      %p181 = scmp.eq.s32.totalorder %s22, 0
      %p182 = por %p180, %p181
      %s183 = ssub.s32 %s23, %s35
      %s184 = ssub.s32 %s24, %s31
      %s185 = sor.u32 %s183, %s184
      %p186 = scmp.eq.s32.totalorder %s185, 0
      %s188 = sadd.s32 %s187, 1
      %s189 = scalar_select %p186, %s187, %s188
      %p192 = pneg %p186
      %p193 = scmp.eq.s32.totalorder %s16, 1
      %p194 = por %p192, %p193
      %p195 = scmp.ne.s32.totalorder %s187, %s190
      %p196 = scmp.eq.s32.totalorder %s16, 0
      %p197 = por %p195, %p196
      %p198 = scmp.ne.s32.totalorder %s187, %s190
      %p199 = scmp.eq.s32.totalorder %s21, 1
      %p200 = por %p198, %p199
      %p201 = scmp.ne.s32.totalorder %s190, %s191
      %p202 = scmp.eq.s32.totalorder %s21, 0
      %p203 = por %p201, %p202
      %p204 = scmp.ne.s32.totalorder %s190, %s191
      %p205 = scmp.eq.s32.totalorder %s22, 1
      %p206 = por %p204, %p205
      %p208 = scmp.ne.s32.totalorder %s191, %s207
      %p209 = scmp.eq.s32.totalorder %s22, 0
      %p210 = por %p208, %p209
      %p211 = scmp.le.s32.totalorder 1, %s16
      %p212 = scmp.lt.s32.totalorder %s16, 3
      %p213 = pnand %p211, %p212
      %p214 = pneg %p213
      // Predicated region
      $region9: #{tpu_custom_call.1} parent=5 // pred_check
        _
      $region10: #{tpu_custom_call.1} parent=5 // pred_check_branch
        %216 = sbr.rel (%p213) target = $region12
      $region11: #{tpu_custom_call.1} parent=5 // pred_region
        %s217 = ssub.s32 %s16, 1
        // Predicated region
        $region13: #{tpu_custom_call.1} parent=11 // pred_check
          %p218 = pneg %p77
        $region14: #{tpu_custom_call.1} parent=11 // pred_check_branch
          %220 = sbr.rel (%p218) target = $region16
        $region15: #{tpu_custom_call.1} parent=11 // pred_region
          _
        $region16: #{tpu_custom_call.1} parent=11 // pred_fallthru
          _
        // Predicated region
        $region17: #{tpu_custom_call.1} parent=11 // pred_check
          %p221 = pneg %p98
        $region18: #{tpu_custom_call.1} parent=11 // pred_check_branch
          %223 = sbr.rel (%p221) target = $region20
        $region19: #{tpu_custom_call.1} parent=11 // pred_region
          _
        $region20: #{tpu_custom_call.1} parent=11 // pred_fallthru
          _
        // Predicated region
        $region21: #{tpu_custom_call.1} parent=11 // pred_check
          %p224 = pneg %p119
        $region22: #{tpu_custom_call.1} parent=11 // pred_check_branch
          %226 = sbr.rel (%p224) target = $region24
        $region23: #{tpu_custom_call.1} parent=11 // pred_region
          _
        $region24: #{tpu_custom_call.1} parent=11 // pred_fallthru
          _
      $region12: #{tpu_custom_call.1} parent=5 // pred_fallthru
        _
      %p227 = scmp.lt.s32.totalorder %s16, 2
      // Predicated region
      $region25: #{tpu_custom_call.1} parent=5 // pred_check
        %p228 = pneg %p227
      $region26: #{tpu_custom_call.1} parent=5 // pred_check_branch
        %230 = sbr.rel (%p228) target = $region28
      $region27: #{tpu_custom_call.1} parent=5 // pred_region
        // Predicated region
        $region29: #{tpu_custom_call.1} parent=27 // pred_check
          %p231 = pneg %p50
        $region30: #{tpu_custom_call.1} parent=27 // pred_check_branch
          %233 = sbr.rel (%p231) target = $region32
        $region31: #{tpu_custom_call.1} parent=27 // pred_region
          %s234 = smul.u32 2, %s24
          %p235 = scmp.lt.s32.totalorder %s23, 1
          %s236 = scalar_select %p235, %s23, 1
          %p237 = scmp.lt.s32.totalorder %s234, 1
          %s238 = scalar_select %p237, %s234, 1
          %s239 = smul.addr %s236, 2
          %s240 = sadd.s32 %s238, %s239
          %s241 = smul.addr %s240, 4
          %s242 = scalar_lea.vmem %s0, %s241
          %s243 = smul.u32 2, %s24
        $region32: #{tpu_custom_call.1} parent=27 // pred_fallthru
          _
      $region28: #{tpu_custom_call.1} parent=5 // pred_fallthru
        _
      %p244 = scmp.le.s32.totalorder 1, %s16
      %p245 = scmp.lt.s32.totalorder %s16, 3
      %p246 = pnand %p244, %p245
      %p247 = pneg %p246
      // Predicated region
      $region33: #{tpu_custom_call.1} parent=5 // pred_check
        _
      $region34: #{tpu_custom_call.1} parent=5 // pred_check_branch
        %249 = sbr.rel (%p246) target = $region36
      $region35: #{tpu_custom_call.1} parent=5 // pred_region
        %s250 = ssub.s32 %s16, 1
        %s251 = smul.u32 2, %s26
        %p252 = scmp.lt.s32.totalorder %s25, 1
        %s253 = scalar_select %p252, %s25, 1
        %p254 = scmp.lt.s32.totalorder %s251, 1
        %s255 = scalar_select %p254, %s251, 1
        %s256 = smul.addr %s253, 2
        %s257 = sadd.s32 %s255, %s256
        %s258 = smul.addr %s257, 4
        %s259 = scalar_lea.vmem %s0, %s258
        %p260 = pneg %p56
        %p261 = pneg %p53
        %p262 = pneg %p77
        %p263 = pneg %p74
        %p264 = pneg %p98
        %p265 = pneg %p95
        %p266 = pneg %p119
        %p267 = pneg %p116
        %p268 = pneg %p147
        %p269 = pneg %p144
        %s270 = sand.u32 %s134, 1
        %s271 = scalar_lea.sflag [#allocation3], %s270
        %s272 = sand.u32 %s134, 1
        %s273 = smul.addr %s272, 32
        %s274 = scalar_lea.vmem [#allocation2], %s273
        %p275 = pneg %p175
        %p276 = pneg %p172
        %p277 = scmp.lt.s32.totalorder %s25, 1
        %s278 = scalar_select %p277, %s25, 1
        %p279 = scmp.lt.s32.totalorder %s26, 0
        %s280 = scalar_select %p279, %s26, 0
        %s281 = smul.addr %s280, 4
        %s282 = smul.addr %s278, 4
        %s283 = sadd.s32 %s281, %s282
        %s284 = smul.addr %s283, 8
        %s285 = scalar_lea.vmem %s5, %s284
        %p286 = pneg %p203
        %p287 = pneg %p200
        %p288 = scmp.lt.s32.totalorder %s25, 1
        %s289 = scalar_select %p288, %s25, 1
        %p290 = scmp.lt.s32.totalorder %s26, 0
        %s291 = scalar_select %p290, %s26, 0
        %s292 = smul.addr %s291, 4
        %s293 = smul.addr %s289, 4
        %s294 = sadd.s32 %s292, %s293
        %s295 = smul.addr %s294, 8
        %s296 = scalar_lea.vmem %s6, %s295
        %s297 = smul.u32 2, %s26
        %p298 = scmp.lt.s32.totalorder %s25, 1
        %s299 = scalar_select %p298, %s25, 1
        %p300 = scmp.lt.s32.totalorder %s297, 1
        %s301 = scalar_select %p300, %s297, 1
        %s302 = smul.addr %s299, 2
        %s303 = sadd.s32 %s301, %s302
        %s304 = smul.addr %s303, 4
        %s305 = scalar_lea.vmem %s0, %s304
        %s306 = smul.u32 2, %s26
        %s307 = smul.u32 2, %s26
        %p308 = scmp.lt.s32.totalorder %s25, 1
        %s309 = scalar_select %p308, %s25, 1
        %p310 = scmp.lt.s32.totalorder %s26, 0
        %s311 = scalar_select %p310, %s26, 0
        %s312 = smul.addr %s311, 4
        %s313 = smul.addr %s309, 4
        %s314 = sadd.s32 %s312, %s313
        %s315 = smul.addr %s314, 8
        %s316 = scalar_lea.vmem %s5, %s315
        %p317 = scmp.lt.s32.totalorder %s25, 1
        %s318 = scalar_select %p317, %s25, 1
        %p319 = scmp.lt.s32.totalorder %s26, 0
        %s320 = scalar_select %p319, %s26, 0
        %s321 = smul.addr %s320, 4
        %s322 = smul.addr %s318, 4
        %s323 = sadd.s32 %s321, %s322
        %s324 = smul.addr %s323, 8
        %s325 = scalar_lea.vmem %s6, %s324
        %v327 = vld [vmem:[%s305] sm:$0xff]
        %v328 = vld [vmem:[%s1] sm:$0xf]
        %330 = vset.pattern.permute.xlu0 0
        %331 = vperm.xlu0 %330, %v328
        %v332 = vpop.permute.xlu0 %331
        %v334 = vunpack.c.l.s4 839922192
        %v335 = vunpack.c.0.s8 %v334
        %v336 = vperm.slane %v332, %v335
        %v338 = vmul.f32 %v327, %v336
        %v339 = vld [vmem:[%s2] sm:$0xf]
        %341 = vset.pattern.permute.xlu0 0
        %342 = vperm.xlu0 %341, %v339
        %v343 = vpop.permute.xlu0 %342
        %v345 = vunpack.c.l.s4 839922192
        %v346 = vunpack.c.0.s8 %v345
        %v347 = vperm.slane %v343, %v346
        %v349 = vadd.f32 %v338, %v347
        %v350 = vmax.f32 %v349, 0.0
        %v351 = vld [vmem:[%s3] sm:$0xf]
        %v352 = vld [vmem:[%s3 + $0x4] sm:$0xf]
        %v353 = vld [vmem:[%s3 + $0x8] sm:$0xf]
        %v354 = vld [vmem:[%s3 + $0xc] sm:$0xf]
        %356 = vst [vmem:[#allocation1] ss:$2 sm:$0xff] %v350
        %v357 = vld.sshfl [vmem:[#allocation1] sm:$0xff pattern:$0x75316420]
        %v358 = vld.sshfl [vmem:[#allocation1 + $0x8] sm:$0xff pattern:$0x75316420]
        %v361 = vpack.c.bf16 %v357, %v357
        %v362 = vpack.c.bf16 %v358, %v358
        %v367 = vunpack.c.l.b16 %v351
        %v368 = vunpack.c.l.b16 %v352
        %v369 = vunpack.c.l.b16 %v353
        %v370 = vunpack.c.l.b16 %v354
        %v371 = vpack.c.b16 %v368, %v367
        %v372 = vpack.c.b16 %v370, %v369
        %vm373 = vcmask 31744
        %v375 = vsel %vm373, %v371, 0
        %v378 = vsel %vm373, %v372, 0
        %vm380 = vcmask 1041408
        %v382 = vsel %vm380, %v361, 0
        %v385 = vsel %vm380, %v362, 0
        %387 = vmatpush.bf16.msra.mxu0 0
        %388 = vmatpush.bf16.msra.mxu0 0
        %389 = vmatpush.bf16.msra.mxu0 0
        %390 = vmatpush.bf16.msra.mxu0 0
        %391 = vmatpush.bf16.msra.mxu0 0
        %392 = vmatpush.bf16.msra.mxu0 0
        %393 = vmatpush.bf16.msra.mxu0 0
        %394 = vmatpush.bf16.msra.mxu0 %v382
        %395 = vmatmul.bf16.gmra.mxu0 %v375
        %v396 = vpop.f32.mrf.mxu0
        %v397 = vadd.f32 0.0, %v396
        %v398 = vpop.f32.mrf.mxu0
        %v399 = vadd.f32 0.0, %v398
        %400 = vmatmul.bf16.gmra.mxu0 %v378
        %v401 = vpop.f32.mrf.mxu0
        %v402 = vadd.f32 0.0, %v401
        %v403 = vpop.f32.mrf.mxu0
        %v404 = vadd.f32 0.0, %v403
        %405 = vdwg.mxu0
        %406 = vmatpush.bf16.msra.mxu0 0
        %407 = vmatpush.bf16.msra.mxu0 0
        %408 = vmatpush.bf16.msra.mxu0 0
        %409 = vmatpush.bf16.msra.mxu0 0
        %410 = vmatpush.bf16.msra.mxu0 0
        %411 = vmatpush.bf16.msra.mxu0 0
        %412 = vmatpush.bf16.msra.mxu0 0
        %413 = vmatpush.bf16.msra.mxu0 %v385
        %414 = vmatmul.bf16.gmra.mxu0 %v375
        %v415 = vpop.f32.mrf.mxu0
        %v416 = vadd.f32 0.0, %v415
        %v417 = vpop.f32.mrf.mxu0
        %v418 = vadd.f32 0.0, %v417
        %419 = vmatmul.bf16.gmra.mxu0 %v378
        %v420 = vpop.f32.mrf.mxu0
        %v421 = vadd.f32 0.0, %v420
        %v422 = vpop.f32.mrf.mxu0
        %v423 = vadd.f32 0.0, %v422
        %424 = vdwg.mxu0
        %v425 = vadd.f32 %v397, %v416
        %426 = vadd.xlane.f32.xlu0 %v425
        %v427 = vpop.xlane.xlu0 %426
        %v428 = vadd.f32 %v399, %v418
        %429 = vadd.xlane.f32.xlu0 %v428
        %v430 = vpop.xlane.xlu0 %429
        %v431 = vadd.f32 %v402, %v421
        %432 = vadd.xlane.f32.xlu0 %v431
        %v433 = vpop.xlane.xlu0 %432
        %v434 = vadd.f32 %v404, %v423
        %435 = vadd.xlane.f32.xlu0 %v434
        %v436 = vpop.xlane.xlu0 %435
        %v437 = vmul.f32 %v427, 0.00390625
        %v438 = vmul.f32 %v430, 0.00390625
        %v439 = vmul.f32 %v433, 0.00390625
        %v440 = vmul.f32 %v436, 0.00390625
        %v441 = vsub.f32 %v397, %v437
        %v442 = vsub.f32 %v416, %v437
        %v443 = vsub.f32 %v399, %v438
        %v444 = vsub.f32 %v418, %v438
        %v445 = vsub.f32 %v402, %v439
        %v446 = vsub.f32 %v421, %v439
        %v447 = vsub.f32 %v404, %v440
        %v448 = vsub.f32 %v423, %v440
        %v449 = vmul.f32 %v441, %v441
        %v450 = vmul.f32 %v442, %v442
        %v451 = vmul.f32 %v443, %v443
        %v452 = vmul.f32 %v444, %v444
        %v453 = vmul.f32 %v445, %v445
        %v454 = vmul.f32 %v446, %v446
        %v455 = vmul.f32 %v447, %v447
        %v456 = vmul.f32 %v448, %v448
        %v457 = vadd.f32 %v449, %v450
        %458 = vadd.xlane.f32.xlu0 %v457
        %v459 = vpop.xlane.xlu0 %458
        %v460 = vadd.f32 %v451, %v452
        %461 = vadd.xlane.f32.xlu0 %v460
        %v462 = vpop.xlane.xlu0 %461
        %v463 = vadd.f32 %v453, %v454
        %464 = vadd.xlane.f32.xlu0 %v463
        %v465 = vpop.xlane.xlu0 %464
        %v466 = vadd.f32 %v455, %v456
        %467 = vadd.xlane.f32.xlu0 %v466
        %v468 = vpop.xlane.xlu0 %467
        %vm469 = vcmask 7168
        %470 = vst.msk [vmem:[%s316] sm:$0xff] %vm469, %v427
        %471 = vst.msk [vmem:[%s316 + $0x8] sm:$0xff] %vm469, %v430
        %472 = vst.msk [vmem:[%s316 + $0x10] sm:$0xff] %vm469, %v433
        %473 = vst.msk [vmem:[%s316 + $0x18] sm:$0xff] %vm469, %v436
        %474 = vst.msk [vmem:[%s325] sm:$0xff] %vm469, %v459
        %475 = vst.msk [vmem:[%s325 + $0x8] sm:$0xff] %vm469, %v462
        %476 = vst.msk [vmem:[%s325 + $0x10] sm:$0xff] %vm469, %v465
        %477 = vst.msk [vmem:[%s325 + $0x18] sm:$0xff] %vm469, %v468
        %v478 = vpack.c.bf16 %v416, %v397
        %v479 = vpack.c.bf16 %v418, %v399
        %v480 = vpack.c.bf16 %v421, %v402
        %v481 = vpack.c.bf16 %v423, %v404
        %482 = vst [vmem:[%s274] sm:$0xff] %v478
        %483 = vst [vmem:[%s274 + $0x8] sm:$0xff] %v479
        %484 = vst [vmem:[%s274 + $0x10] sm:$0xff] %v480
        %485 = vst [vmem:[%s274 + $0x18] sm:$0xff] %v481
        %s486 = sand.u32 %s134, 1
        %s487 = scalar_lea.sflag [#allocation3], %s486
        %s488 = sand.u32 %s134, 1
        %s489 = smul.addr %s488, 32
        %s490 = scalar_lea.vmem [#allocation2], %s489
        %p491 = scmp.lt.s32.totalorder %s25, 1
        %s492 = scalar_select %p491, %s25, 1
        %p493 = scmp.lt.s32.totalorder %s26, 0
        %s494 = scalar_select %p493, %s26, 0
        %s495 = smul.addr %s494, 4
        %s496 = smul.addr %s492, 4
        %s497 = sadd.s32 %s495, %s496
        %s498 = smul.addr %s497, 8
        %s499 = scalar_lea.vmem %s5, %s498
        %p500 = scmp.lt.s32.totalorder %s25, 1
        %s501 = scalar_select %p500, %s25, 1
        %p502 = scmp.lt.s32.totalorder %s26, 0
        %s503 = scalar_select %p502, %s26, 0
        %s504 = smul.addr %s503, 4
        %s505 = smul.addr %s501, 4
        %s506 = sadd.s32 %s504, %s505
        %s507 = smul.addr %s506, 8
        %s508 = scalar_lea.vmem %s6, %s507
        // Predicated region
        $region37: #{tpu_custom_call.1} parent=35 // pred_check
          %p509 = pneg %p144
        $region38: #{tpu_custom_call.1} parent=35 // pred_check_branch
          %511 = sbr.rel (%p509) target = $region40
        $region39: #{tpu_custom_call.1} parent=35 // pred_region
          %s512 = smul.u32 2, %s26
          %514 = vsyncadd %s487, 0
          %s515 = smul.addr %s25, 8
          %s516 = sadd.s32 %s512, %s515
          %s517 = smul.addr %s516, 4
          %s518 = scalar_lea.hbm %s4, %s517
          %s519 = sshll.u32 %s490, 4
          %s520 = int_to_ptr.vmem [resolvable:$true] %s519
          %s521 = sshll.u32 %s518, 4
          %s522 = int_to_ptr.hbm [resolvable:$true] %s521
          %527 = dma.vmem_to_hbm [thread:$0]  %s520, 512, %s522, %s487, 128, 128, 8
        $region40: #{tpu_custom_call.1} parent=35 // pred_fallthru
          _
        // Predicated region
        $region41: #{tpu_custom_call.1} parent=35 // pred_check
          %p528 = pneg %p172
        $region42: #{tpu_custom_call.1} parent=35 // pred_check_branch
          %530 = sbr.rel (%p528) target = $region44
        $region43: #{tpu_custom_call.1} parent=35 // pred_region
          _
        $region44: #{tpu_custom_call.1} parent=35 // pred_fallthru
          _
        // Predicated region
        $region45: #{tpu_custom_call.1} parent=35 // pred_check
          %p531 = pneg %p200
        $region46: #{tpu_custom_call.1} parent=35 // pred_check_branch
          %533 = sbr.rel (%p531) target = $region48
        $region47: #{tpu_custom_call.1} parent=35 // pred_region
          _
        $region48: #{tpu_custom_call.1} parent=35 // pred_fallthru
          _
      $region36: #{tpu_custom_call.1} parent=5 // pred_fallthru
        _
      %p534 = scmp.le.s32.totalorder 2, %s16
      // Predicated region
      $region49: #{tpu_custom_call.1} parent=5 // pred_check
        %p535 = pneg %p534
      $region50: #{tpu_custom_call.1} parent=5 // pred_check_branch
        %537 = sbr.rel (%p535) target = $region52
      $region51: #{tpu_custom_call.1} parent=5 // pred_region
        %s538 = ssub.s32 %s16, 2
        // Predicated region
        $region53: #{tpu_custom_call.1} parent=51 // pred_check
          %p539 = pneg %p150
        $region54: #{tpu_custom_call.1} parent=51 // pred_check_branch
          %541 = sbr.rel (%p539) target = $region56
        $region55: #{tpu_custom_call.1} parent=51 // pred_region
          %s542 = sand.u32 %s135, 1
          %s543 = scalar_lea.sflag [#allocation3], %s542
          %s544 = sand.u32 %s135, 1
          %s545 = smul.addr %s544, 32
          %s546 = scalar_lea.vmem [#allocation2], %s545
          %548 = dma.done %s543, 512
        $region56: #{tpu_custom_call.1} parent=51 // pred_fallthru
          _
        // Predicated region
        $region57: #{tpu_custom_call.1} parent=51 // pred_check
          %p549 = pneg %p178
        $region58: #{tpu_custom_call.1} parent=51 // pred_check_branch
          %551 = sbr.rel (%p549) target = $region60
        $region59: #{tpu_custom_call.1} parent=51 // pred_region
          %p552 = scmp.lt.s32.totalorder %s27, 1
          %s553 = scalar_select %p552, %s27, 1
          %p554 = scmp.lt.s32.totalorder %s28, 0
          %s555 = scalar_select %p554, %s28, 0
          %s556 = smul.addr %s555, 4
          %s557 = smul.addr %s553, 4
          %s558 = sadd.s32 %s556, %s557
          %s559 = smul.addr %s558, 8
          %s560 = scalar_lea.vmem %s5, %s559
        $region60: #{tpu_custom_call.1} parent=51 // pred_fallthru
          _
        // Predicated region
        $region61: #{tpu_custom_call.1} parent=51 // pred_check
          %p561 = pneg %p206
        $region62: #{tpu_custom_call.1} parent=51 // pred_check_branch
          %563 = sbr.rel (%p561) target = $region64
        $region63: #{tpu_custom_call.1} parent=51 // pred_region
          %p564 = scmp.lt.s32.totalorder %s27, 1
          %s565 = scalar_select %p564, %s27, 1
          %p566 = scmp.lt.s32.totalorder %s28, 0
          %s567 = scalar_select %p566, %s28, 0
          %s568 = smul.addr %s567, 4
          %s569 = smul.addr %s565, 4
          %s570 = sadd.s32 %s568, %s569
          %s571 = smul.addr %s570, 8
          %s572 = scalar_lea.vmem %s6, %s571
        $region64: #{tpu_custom_call.1} parent=51 // pred_fallthru
          _
      $region52: #{tpu_custom_call.1} parent=5 // pred_fallthru
        _
    $region6: #{tpu_custom_call.1} parent=1 // loop_footer
      %s20 = sadd.s32 1, %s16
    $region7: #{tpu_custom_call.1} parent=1 // loop_footer_branch
      %15 = sbr.rel target = $region3
    $region8: #{tpu_custom_call.1} parent=1 // loop_exit
      _
    %573 = vsyncpa [#allocation3], 1
    %s574 = scalar_lea.sflag [#allocation3], 1
    %575 = vsyncpa %s574, 1

</llo_original>
